<compile_context>
chip_gen: v7x
topology: tpu7x:2x2x1
jax: 0.10.0
libtpu: 0.0.40
codegen_flags: <defaults>
</compile_context>

<pallas_src>
import math

import jax
import jax.numpy as jnp
from jax.experimental import pallas as pl
from jax.experimental.pallas import tpu as pltpu


LATENT_DIM = 50
NUM_CLASSES = 10
PADDED_CLASSES = 128          # lane-dense width for the matmul / softmax math
NEG_BIG = -1e30               # finite "minus infinity" for padded class logits
DEFAULT_TILE_B = 4096         # row tile; ~9 MiB double-buffered (incl. lane padding)


def _round_up(n, m):
    return ((n + m - 1) // m) * m


def linear_softmax_kernel(x_ref, w_ref, b_ref, o_ref):
    # MXU matmul (f32 accumulate) + bias, then numerically-stable softmax.
    logits = jnp.dot(x_ref[...], w_ref[...],
                     preferred_element_type=jnp.float32) + b_ref[...]
    m = jnp.max(logits, axis=-1, keepdims=True)      # padded lanes are -1e30, never win
    e = jnp.exp(logits - m)                          # padded lanes -> exp(-huge) == 0
    denom = jnp.sum(e, axis=-1, keepdims=True)
    probs = e / denom                                # exact divide: rows sum to 1
    # Store only the 10 real class lanes (narrow HBM writeback).
    o_ref[...] = probs[:, :NUM_CLASSES].astype(o_ref.dtype)


def linear_classifier_forward(x, w, b, *, tile_b=DEFAULT_TILE_B):
    """softmax(x @ w + b) over the class axis, in one Pallas TPU kernel.

    x: [B, latent_dim]   (f32; bf16 also fine — the dot accumulates in f32)
    w: [latent_dim, 10]  (kept in its own dtype)
    b: [10]
    returns: [B, 10] probabilities (rows sum to 1).
    """
    B, D = x.shape
    O = w.shape[1]
    OP = PADDED_CLASSES

    # Lane-dense weight/bias for the matmul: zero-pad W columns, padded bias -> -1e30.
    w_pad = jnp.zeros((D, OP), dtype=w.dtype).at[:, :O].set(w)
    b_pad = jnp.full((1, OP), NEG_BIG, dtype=jnp.float32).at[0, :O].set(
        b.astype(jnp.float32))

    # Row tile: multiple of 8 (sublane). Clamp so the grid has >= 2 blocks whenever
    # B allows it (megacore sharding on v7x); last block may be partial (no jnp.pad).
    TB = min(tile_b, max(8, _round_up(pl.cdiv(B, 2), 8)))
    grid = (pl.cdiv(B, TB),)

    out_dtype = x.dtype
    out_itemsize = jnp.dtype(out_dtype).itemsize

    out = pl.pallas_call(
        linear_softmax_kernel,
        out_shape=jax.ShapeDtypeStruct((B, O), out_dtype),
        grid_spec=pltpu.PrefetchScalarGridSpec(
            num_scalar_prefetch=0,
            grid=grid,
            in_specs=[
                pl.BlockSpec((TB, D), lambda i: (i, 0)),   # x: streamed row tiles
                pl.BlockSpec((D, OP), lambda i: (0, 0)),   # W: VMEM-resident
                pl.BlockSpec((1, OP), lambda i: (0, 0)),   # b: VMEM-resident
            ],
            out_specs=pl.BlockSpec((TB, O), lambda i: (i, 0)),  # narrow (TB, 10) writes
        ),
        compiler_params=pltpu.CompilerParams(
            dimension_semantics=("parallel",),             # megacore on v7x
            vmem_limit_bytes=32 * 1024 * 1024,             # headroom on all generations
        ),
        cost_estimate=pl.CostEstimate(
            flops=2 * B * D * OP,
            transcendentals=B * OP + B,                    # exp lanes + per-row divide
            bytes_accessed=B * D * x.dtype.itemsize        # x read
            + B * O * out_itemsize                         # narrow output write
            + D * OP * w_pad.dtype.itemsize                # W read (once)
            + OP * 4,                                      # bias read (once)
        ),
    )(x, w_pad, b_pad)
    return out


def init_params(key, in_features=LATENT_DIM, out_features=NUM_CLASSES):
    # Matches torch.nn.Linear default init: U(-1/sqrt(in), 1/sqrt(in))
    kw, kb = jax.random.split(key)
    bound = 1.0 / math.sqrt(in_features)
    w = jax.random.uniform(kw, (in_features, out_features),
                           minval=-bound, maxval=bound, dtype=jnp.float32)
    b = jax.random.uniform(kb, (out_features,),
                           minval=-bound, maxval=bound, dtype=jnp.float32)
    return w, b


if __name__ == "__main__":
    key = jax.random.PRNGKey(0)
    kx, kp = jax.random.split(key)

    B = 8
    x = jax.random.normal(kx, (B, LATENT_DIM), dtype=jnp.float32)
    w, b = init_params(kp)

    probs = linear_classifier_forward(x, w, b)
    probs = jax.block_until_ready(probs)

    # Reference check (plain JAX). Exact division in the kernel -> tight tolerances.
    ref = jax.nn.softmax(x @ w + b, axis=-1)
    assert probs.shape == (B, NUM_CLASSES)
    assert jnp.allclose(probs, ref, atol=1e-4, rtol=1e-4)
    assert jnp.allclose(jnp.sum(probs, axis=-1), 1.0, atol=1e-5)

    print("KERNEL_OK")
</pallas_src>

<mosaic_0001>
module attributes {stable_mosaic.version = 11 : i64} {
  func.func @linear_softmax_kernel(%arg0: i32, %arg1: memref<8x50xf32, #tpu.memory_space<vmem>>, %arg2: memref<50x128xf32, #tpu.memory_space<vmem>>, %arg3: memref<1x128xf32, #tpu.memory_space<vmem>>, %arg4: memref<8x10xf32, #tpu.memory_space<vmem>>) attributes {dimension_semantics = [#tpu.dimension_semantics<parallel>], iteration_bounds = array<i64: 1>, scalar_prefetch = 0 : i64, scratch_operands = 0 : i64, tpu.core_type = #tpu.core_type<tc>, window_params = [{transform_indices = @transform_0, window_bounds = array<i64: 8, 50>}, {pipeline_mode = #tpu.pipeline_mode<synchronous>, transform_indices = @transform_1, window_bounds = array<i64: 50, 128>}, {pipeline_mode = #tpu.pipeline_mode<synchronous>, transform_indices = @transform_2, window_bounds = array<i64: 1, 128>}, {transform_indices = @transform_3, window_bounds = array<i64: 8, 10>}]} {
    %c0 = arith.constant 0 : index
    %c0_0 = arith.constant 0 : index
    %0 = vector.load %arg1[%c0, %c0_0] : memref<8x50xf32, #tpu.memory_space<vmem>>, vector<8x50xf32>
    %c0_1 = arith.constant 0 : index
    %c0_2 = arith.constant 0 : index
    %1 = vector.load %arg2[%c0_1, %c0_2] : memref<50x128xf32, #tpu.memory_space<vmem>>, vector<50x128xf32>
    %cst = arith.constant dense<0.000000e+00> : vector<8x128xf32>
    %2 = tpu.matmul %0, %1, %cst {dimension_numbers = #tpu.dot_dimension_numbers<[1], [0], [0], [1], [0, 0, 1, 1], [], []>} : vector<8x50xf32>, vector<50x128xf32>, vector<8x128xf32> -> vector<8x128xf32>
    %c0_3 = arith.constant 0 : index
    %c0_4 = arith.constant 0 : index
    %3 = vector.load %arg3[%c0_3, %c0_4] : memref<1x128xf32, #tpu.memory_space<vmem>>, vector<1x128xf32>
    %4 = vector.broadcast %3 : vector<1x128xf32> to vector<8x128xf32>
    %5 = arith.addf %2, %4 : vector<8x128xf32>
    %cst_5 = arith.constant dense<0xFF800000> : vector<8xf32>
    %6 = vector.multi_reduction <maximumf>, %5, %cst_5 [1] : vector<8x128xf32> to vector<8xf32>
    %7 = vector.shape_cast %6 : vector<8xf32> to vector<8x1xf32>
    %8 = vector.broadcast %7 : vector<8x1xf32> to vector<8x128xf32>
    %9 = arith.subf %5, %8 : vector<8x128xf32>
    %10 = math.exp %9 : vector<8x128xf32>
    %cst_6 = arith.constant dense<0.000000e+00> : vector<8xf32>
    %11 = vector.multi_reduction <add>, %10, %cst_6 [1] : vector<8x128xf32> to vector<8xf32>
    %12 = vector.shape_cast %11 : vector<8xf32> to vector<8x1xf32>
    %13 = vector.broadcast %12 : vector<8x1xf32> to vector<8x128xf32>
    %14 = arith.divf %10, %13 : vector<8x128xf32>
    %15 = vector.extract_strided_slice %14 {offsets = [0, 0], sizes = [8, 10], strides = [1, 1]} : vector<8x128xf32> to vector<8x10xf32>
    %c0_7 = arith.constant 0 : index
    %c0_8 = arith.constant 0 : index
    %16 = vector.load %arg4[%c0_7, %c0_8] : memref<8x10xf32, #tpu.memory_space<vmem>>, vector<8x10xf32>
    tpu.vector_store %arg4[%c0_7, %c0_8], %15 {strides = array<i32>} : memref<8x10xf32, #tpu.memory_space<vmem>>, vector<8x10xf32>,
    return
  }
  func.func @transform_0(%arg0: i32) -> (i32, i32) {
    %c0_i32 = arith.constant 0 : i32
    %c0_i32_0 = arith.constant 0 : i32
    return %arg0, %c0_i32 : i32, i32
  }
  func.func @transform_1(%arg0: i32) -> (i32, i32) {
    %c0_i32 = arith.constant 0 : i32
    %c0_i32_0 = arith.constant 0 : i32
    %c0_i32_1 = arith.constant 0 : i32
    return %c0_i32, %c0_i32_0 : i32, i32
  }
  func.func @transform_2(%arg0: i32) -> (i32, i32) {
    %c0_i32 = arith.constant 0 : i32
    %c0_i32_0 = arith.constant 0 : i32
    %c0_i32_1 = arith.constant 0 : i32
    return %c0_i32, %c0_i32_0 : i32, i32
  }
  func.func @transform_3(%arg0: i32) -> (i32, i32) {
    %c0_i32 = arith.constant 0 : i32
    %c0_i32_0 = arith.constant 0 : i32
    return %arg0, %c0_i32 : i32, i32
  }
}

</mosaic_0001>

<llo_original>
// kernel: tpu_custom_call.1
$region0: #{tpu_custom_call.1}
  #allocation0 [shape = 'u32[]', space=smem, size = 0x4, offset = 0x4, fixed_abs, tag = 'smem constant byte address 0x4 - core index']
  #allocation1 [shape = 'u32[144,128]{1,0:T(1,128)}', space=vmem, size = 0x12000, scoped, tag = 'internal scratch']
  %s0 = inlined_call_operand.hbm [shape: f32[8,50], index: 0, kind: input, shape index: {}]
  %s1 = inlined_call_operand.hbm [shape: f32[50,128], index: 1, kind: input, shape index: {}]
  %s2 = inlined_call_operand.vmem [shape: f32[1,128], index: 2, kind: input, shape index: {}]
  %s3 = inlined_call_operand.hbm [shape: f32[8,10], index: 3, kind: output, shape index: {}]
  %s4 = sld [smem:[#allocation0]]
  $region30: #{tpu_custom_call.1} parent=0
    _
  %s6 = ssub.s32 1, %s4
  %s7 = scalar_select 0, %s6, %s4
  $region1: #{tpu_custom_call.1} parent=0
    #allocation2 [shape = 'u8[4096]{0}', space=vmem, size = 0x1000, scoped, tag = 'input window, operand 0, single buffered']
    #allocation3 [shape = 's32[1]{0}', space=sflag, size = 0x4, scoped, tag = 'scoped memory for tpu_custom_call.1']
    #allocation4 [shape = 's32[1]{0}', space=sflag, size = 0x4, scoped, tag = 'scoped memory for tpu_custom_call.1']
    #allocation5 [shape = 'u8[28672]{0}', space=vmem, size = 0x7000, scoped, tag = 'input window, operand 1, single buffered']
    #allocation6 [shape = 's32[1]{0}', space=sflag, size = 0x4, scoped, tag = 'scoped memory for tpu_custom_call.1']
    #allocation7 [shape = 'u8[4096]{0}', space=vmem, size = 0x1000, scoped, tag = 'output window, operand 0, single buffered']
    %8 = vsyncpa [#allocation3], 0
    %9 = vsyncpa [#allocation6], 0
    %10 = vsyncpa [#allocation4], 0
    // Predicated region
    $region2: #{tpu_custom_call.1} parent=1 // pred_check
      _
    $region3: #{tpu_custom_call.1} parent=1 // pred_check_branch
      %12 = sbr.rel (0) target = $region5
    $region4: #{tpu_custom_call.1} parent=1 // pred_region
      %s14 = ssub.s32 128, 128
      %15 = vsyncadd [#allocation3], %s14
      %s17 = sshll.u32 [#allocation2], 4
      %s18 = int_to_ptr.vmem [resolvable:$true] %s17
      %20 = dma.hbm_to_vmem [thread:$0]  %s0, 128, %s18, [#allocation3]
    $region5: #{tpu_custom_call.1} parent=1 // pred_fallthru
      _
    // Predicated region
    $region6: #{tpu_custom_call.1} parent=1 // pred_check
      _
    $region7: #{tpu_custom_call.1} parent=1 // pred_check_branch
      %22 = sbr.rel (0) target = $region9
    $region8: #{tpu_custom_call.1} parent=1 // pred_region
      %s24 = ssub.s32 896, 896
      %25 = vsyncadd [#allocation6], %s24
      %s26 = sshll.u32 [#allocation5], 4
      %s27 = int_to_ptr.vmem [resolvable:$true] %s26
      %32 = dma.hbm_to_vmem [thread:$0]  %s1, 896, %s27, [#allocation6], 128, 128, 8
    $region9: #{tpu_custom_call.1} parent=1 // pred_fallthru
      _
    // Predicated region
    $region10: #{tpu_custom_call.1} parent=1 // pred_check
      _
    $region11: #{tpu_custom_call.1} parent=1 // pred_check_branch
      %34 = sbr.rel (0) target = $region13
    $region12: #{tpu_custom_call.1} parent=1 // pred_region
      _
    $region13: #{tpu_custom_call.1} parent=1 // pred_fallthru
      _
    // Predicated region
    $region14: #{tpu_custom_call.1} parent=1 // pred_check
      _
    $region15: #{tpu_custom_call.1} parent=1 // pred_check_branch
      %36 = sbr.rel (0) target = $region17
    $region16: #{tpu_custom_call.1} parent=1 // pred_region
      %37 = dma.done [#allocation3], 128
    $region17: #{tpu_custom_call.1} parent=1 // pred_fallthru
      _
    // Predicated region
    $region18: #{tpu_custom_call.1} parent=1 // pred_check
      _
    $region19: #{tpu_custom_call.1} parent=1 // pred_check_branch
      %39 = sbr.rel (0) target = $region21
    $region20: #{tpu_custom_call.1} parent=1 // pred_region
      %40 = dma.done [#allocation6], 896
    $region21: #{tpu_custom_call.1} parent=1 // pred_fallthru
      _
    %v41 = vld [vmem:[#allocation2] sm:$0xff]
    %v42 = vld [vmem:[#allocation5] sm:$0xff]
    %v43 = vld [vmem:[#allocation5 + $0x8] sm:$0xff]
    %v44 = vld [vmem:[#allocation5 + $0x10] sm:$0xff]
    %v45 = vld [vmem:[#allocation5 + $0x18] sm:$0xff]
    %v46 = vld [vmem:[#allocation5 + $0x20] sm:$0xff]
    %v47 = vld [vmem:[#allocation5 + $0x28] sm:$0xff]
    %v48 = vld [vmem:[#allocation5 + $0x30] sm:$0x3]
    %v49 = vld [vmem:[%s2] sm:$0x1]
    %v51 = vlaneseq
    %v52 = vshrl.u32 %v51, 7
    %v53 = vsub.s32 0, %v52
    %v54 = vrot.slane %v49, %v53
    %vm56 = vcmask 408576
    %v58 = vsel %vm56, %v41, 0
    %vm60 = vcmask 1041408
    %v62 = vsel %vm60, %v48, 0
    %64 = vmatprep.subr.mxu0 0.0
    %65 = vmatpush1.msra.mxu0 %v42
    %66 = vmatprep.subr.mxu0 0.0
    %67 = vmatpush1.msra.mxu0 %v43
    %68 = vmatprep.subr.mxu0 0.0
    %69 = vmatpush1.msra.mxu0 %v44
    %70 = vmatprep.subr.mxu0 0.0
    %71 = vmatpush1.msra.mxu0 %v45
    %72 = vmatprep.subr.mxu0 0.0
    %73 = vmatpush1.msra.mxu0 %v46
    %74 = vmatprep.subr.mxu0 0.0
    %75 = vmatpush1.msra.mxu0 %v47
    %76 = vmatprep.subr.mxu0 0.0
    %77 = vmatpush1.msra.mxu0 %v62
    %78 = vmatprep.subr.mxu0 0.0
    %79 = vmatpush1.msra.mxu0 0.0
    %80 = vmatprep.subr.mxu0 0.0
    %81 = vmatpush1.msra.mxu0 0.0
    %82 = vmatprep.subr.mxu0 0.0
    %83 = vmatpush1.msra.mxu0 0.0
    %84 = vmatprep.subr.mxu0 0.0
    %85 = vmatpush1.msra.mxu0 0.0
    %86 = vmatprep.subr.mxu0 0.0
    %87 = vmatpush1.msra.mxu0 0.0
    %88 = vmatprep.subr.mxu0 0.0
    %89 = vmatpush1.msra.mxu0 0.0
    %90 = vmatprep.subr.mxu0 0.0
    %91 = vmatpush1.msra.mxu0 0.0
    %92 = vmatprep.subr.mxu0 0.0
    %93 = vmatpush1.msra.mxu0 0.0
    %94 = vmatprep.subr.mxu0 0.0
    %95 = vmatpush1.msra.mxu0 0.0
    %96 = vmatprep.subr.mxu0 0.0
    %97 = vmatpush1.msra.mxu0 0.0
    %98 = vmatprep.subr.mxu0 0.0
    %99 = vmatpush1.msra.mxu0 0.0
    %100 = vmatprep.subr.mxu0 0.0
    %101 = vmatpush1.msra.mxu0 0.0
    %102 = vmatprep.subr.mxu0 0.0
    %103 = vmatpush1.msra.mxu0 0.0
    %104 = vmatprep.subr.mxu0 0.0
    %105 = vmatpush1.msra.mxu0 0.0
    %106 = vmatprep.subr.mxu0 0.0
    %107 = vmatpush1.msra.mxu0 0.0
    %108 = vmatprep.subr.mxu0 0.0
    %109 = vmatpush1.msra.mxu0 0.0
    %110 = vmatprep.subr.mxu0 0.0
    %111 = vmatpush1.msra.mxu0 0.0
    %112 = vmatprep.subr.mxu0 0.0
    %113 = vmatpush1.msra.mxu0 0.0
    %114 = vmatprep.subr.mxu0 0.0
    %115 = vmatpush1.msra.mxu0 0.0
    %116 = vmatprep.subr.mxu0 0.0
    %117 = vmatpush1.msra.mxu0 0.0
    %118 = vmatprep.subr.mxu0 0.0
    %119 = vmatpush1.msra.mxu0 0.0
    %120 = vmatprep.subr.mxu0 0.0
    %121 = vmatpush1.msra.mxu0 0.0
    %122 = vmatprep.subr.mxu0 0.0
    %123 = vmatpush1.msra.mxu0 0.0
    %124 = vmatprep.subr.mxu0 0.0
    %125 = vmatpush1.msra.mxu0 0.0
    %126 = vmatprep.subr.mxu0 0.0
    %127 = vmatpush1.msra.mxu0 0.0
    %128 = vmatprep.mubr.f32.mxu0 0.0
    %129 = vmatmul.mubr.f32.gmra.mrb[0].mxu0 %v58
    %v130 = vpop.f32.mrb[0].mxu0
    %v131 = vadd.f32 %v54, %v130
    %v132 = vpop.f32.mrb[0].mxu0
    %133 = vdwg.mxu0
    %134 = vmax.xlane.f32.xlu0 %v131
    %v135 = vpop.xlane.xlu0 %134
    %v136 = vsub.f32 %v131, %v135
    %v137 = vmul.f32 %v136, 1.442695
    %v138 = vpow.pop %v137
    %139 = vadd.xlane.f32.xlu0 %v138
    %v140 = vpop.xlane.xlu0 %139
    %v141 = vrcp.pop %v140
    %v142 = vmul.f32 %v138, %v141
    %vm143 = vcmask 80896
    %144 = vst.msk [vmem:[#allocation7] sm:$0xff] %vm143, %v142
    // Predicated region
    $region22: #{tpu_custom_call.1} parent=1 // pred_check
      _
    $region23: #{tpu_custom_call.1} parent=1 // pred_check_branch
      %146 = sbr.rel (0) target = $region25
    $region24: #{tpu_custom_call.1} parent=1 // pred_region
      %s148 = ssub.s32 128, 128
      %149 = vsyncadd [#allocation4], %s148
      %s151 = sshll.u32 [#allocation7], 4
      %s152 = int_to_ptr.vmem [resolvable:$true] %s151
      %154 = dma.vmem_to_hbm [thread:$0]  %s152, 128, %s3, [#allocation4]
    $region25: #{tpu_custom_call.1} parent=1 // pred_fallthru
      _
    // Predicated region
    $region26: #{tpu_custom_call.1} parent=1 // pred_check
      _
    $region27: #{tpu_custom_call.1} parent=1 // pred_check_branch
      %156 = sbr.rel (0) target = $region29
    $region28: #{tpu_custom_call.1} parent=1 // pred_region
      %157 = dma.done [#allocation4], 128
    $region29: #{tpu_custom_call.1} parent=1 // pred_fallthru
      _
    %158 = vsyncpa [#allocation3], 1
    %159 = vsyncpa [#allocation6], 1
    %160 = vsyncpa [#allocation4], 1

</llo_original>
